<compile_context>
chip_gen: v6e
topology: v6e:2x2x1
jax: 0.10.0
libtpu: 0.0.40
codegen_flags: <defaults>
</compile_context>

<pallas_src>
import functools

import jax
import jax.numpy as jnp
from jax.experimental import pallas as pl
from jax.experimental.pallas import tpu as pltpu


_VMEM_LIMIT_BYTES = 48 * 1024 * 1024   # safe on v5e / v6e / v7x
_BLOCK_BUDGET_BYTES = 40 * 1024 * 1024  # in/out double-buffers + residents


# ---------------------------------------------------------------------------
# Kernels
# ---------------------------------------------------------------------------

def _se_kernel_3d(x_ref, w1t_ref, w2t_ref, o_ref):
    """Primary path: block = (TB, C, L) with C, L the full dims (L % 128 == 0).

    squeeze : lane reduce on the XLU (slack unit)
    excite  : two small MXU matmuls, f32 accumulation
    rescale : lane-broadcast multiply on the VPU, f32 until the final store
    """
    x = x_ref[...]                                                  # (TB, C, L)
    y = jnp.mean(x, axis=-1, dtype=jnp.float32)                     # (TB, C)
    h = jnp.maximum(
        jnp.dot(y, w1t_ref[...], preferred_element_type=jnp.float32), 0.0)
    s = jax.nn.sigmoid(
        jnp.dot(h, w2t_ref[...], preferred_element_type=jnp.float32))   # (TB, C)
    o_ref[...] = (x * s[:, :, None]).astype(o_ref.dtype)


def _se_kernel_flat(x_ref, w1t_ref, w2t_ref, pool_ref, expand_ref, o_ref,
                    *, inv_l):
    """Small-L fallback: block = (TB, C*L) lane-dense slab.

    Pool / channel->lane broadcast are matmuls against tiny block-diagonal
    constants so stores stay unmasked even when L < 128.  pool_ref holds exact
    ones; the 1/L scale is applied in f32.
    """
    x = x_ref[...]                                                  # (TB, C*L)
    y = jnp.dot(x, pool_ref[...],
                preferred_element_type=jnp.float32) * inv_l         # (TB, C)
    h = jnp.maximum(
        jnp.dot(y, w1t_ref[...], preferred_element_type=jnp.float32), 0.0)
    s = jax.nn.sigmoid(
        jnp.dot(h, w2t_ref[...], preferred_element_type=jnp.float32))
    s_full = jnp.dot(s, expand_ref[...],
                     preferred_element_type=jnp.float32)            # (TB, C*L)
    o_ref[...] = (x * s_full).astype(o_ref.dtype)                   # f32 mult, one cast


# ---------------------------------------------------------------------------
# Batch-tile selection
# ---------------------------------------------------------------------------

def _round_down(v, m):
    return (v // m) * m


def _choose_tb(batch, row_bytes, resident_bytes, itemsize, align_sublane):
    """Largest batch tile that fits the VMEM budget (2 in + 2 out buffers plus
    the resident constants), keeps >=2 grid steps when the batch allows it
    (v7x megacore; >=4 for large batches so DMAs pipeline), and respects the
    sublane tile when the batch axis is one of the last two block dims."""
    sublane = {4: 8, 2: 16, 1: 32}.get(itemsize, 8)
    avail = max(0, _BLOCK_BUDGET_BYTES - resident_bytes)
    cap = max(1, avail // (4 * row_bytes))            # 2 in + 2 out buffers

    if batch <= 2 or batch <= sublane:
        # Tiny batch: one (full) block.  When the batch axis is the
        # second-to-last block dim it must equal the full dim unless it is a
        # multiple of the sublane tile.
        return batch if align_sublane else max(1, min(batch, cap))

    steps = 4 if batch >= 1024 else 2                 # pipelining / megacore
    tb = -(-batch // steps)                           # ceil(batch / steps)
    tb = min(tb, cap)
    if align_sublane:
        tb = max(sublane, _round_down(tb, sublane))
    return max(1, min(tb, batch))


# ---------------------------------------------------------------------------
# Wrapper
# ---------------------------------------------------------------------------

def se_block(x, w1, w2):
    """x: (B, C, L); w1: (H, C); w2: (C, H)  (PyTorch Linear (out, in) layout)."""
    B, C, L = x.shape
    H = w1.shape[0]
    assert w1.shape == (H, C) and w2.shape == (C, H)
    itemsize = jnp.dtype(x.dtype).itemsize

    # one-time wrapper-side layout work (plain XLA ops, outside the kernel)
    w1t = jnp.asarray(w1).T                           # (C, H)
    w2t = jnp.asarray(w2).T                           # (H, C)
    w_itemsize = jnp.dtype(w1t.dtype).itemsize

    use_3d = (L % 128 == 0)
    row_bytes = C * L * itemsize

    def _run(single_buffer_residents):
        def resident(shape, index_map):
            if single_buffer_residents:
                return pl.BlockSpec(shape, index_map,
                                    pipeline_mode=pl.Buffered(1))
            return pl.BlockSpec(shape, index_map)

        if use_3d:
            kernel = _se_kernel_3d
            resident_bytes = 2 * (w1t.size + w2t.size) * w_itemsize
            tb = _choose_tb(B, row_bytes, resident_bytes, itemsize,
                            align_sublane=False)
            grid = (pl.cdiv(B, tb),)
            in_specs = [
                pl.BlockSpec((tb, C, L), lambda b: (b, 0, 0)),   # x (pipelined)
                resident((C, H), lambda b: (0, 0)),              # W1^T
                resident((H, C), lambda b: (0, 0)),              # W2^T
            ]
            out_spec = pl.BlockSpec((tb, C, L), lambda b: (b, 0, 0))
            args = (x, w1t, w2t)
            out_shape = jax.ShapeDtypeStruct((B, C, L), x.dtype)
            flops = 3 * B * C * L + 4 * B * C * H
            bytes_accessed = 2 * B * C * L * itemsize + 2 * C * H * w_itemsize
        else:
            CL = C * L
            inv_l = 1.0 / float(L)
            kernel = functools.partial(_se_kernel_flat, inv_l=inv_l)
            eye_c = jnp.eye(C, dtype=x.dtype)
            pool_mat = jnp.kron(eye_c, jnp.ones((L, 1), dtype=x.dtype))    # (CL, C)
            expand_mat = jnp.kron(eye_c, jnp.ones((1, L), dtype=x.dtype))  # (C, CL)
            resident_bytes = (2 * (w1t.size + w2t.size) * w_itemsize
                              + 2 * (pool_mat.size + expand_mat.size) * itemsize)
            tb = _choose_tb(B, row_bytes, resident_bytes, itemsize,
                            align_sublane=True)
            grid = (pl.cdiv(B, tb),)
            x2d = x.reshape(B, CL)                    # free row-major flatten
            in_specs = [
                pl.BlockSpec((tb, CL), lambda b: (b, 0)),        # x rows (pipelined)
                resident((C, H), lambda b: (0, 0)),              # W1^T
                resident((H, C), lambda b: (0, 0)),              # W2^T
                resident((CL, C), lambda b: (0, 0)),             # pool (ones)
                resident((C, CL), lambda b: (0, 0)),             # expand (ones)
            ]
            out_spec = pl.BlockSpec((tb, CL), lambda b: (b, 0))
            args = (x2d, w1t, w2t, pool_mat, expand_mat)
            out_shape = jax.ShapeDtypeStruct((B, CL), x.dtype)
            flops = (2 * B * CL * C + 4 * B * C * H + 2 * B * C * CL + 2 * B * CL)
            bytes_accessed = ((2 * B * CL + 2 * CL * C) * itemsize
                              + 2 * C * H * w_itemsize)

        cost = pl.CostEstimate(flops=int(flops),
                               transcendentals=int(B * C),
                               bytes_accessed=int(bytes_accessed))

        out = pl.pallas_call(
            kernel,
            out_shape=out_shape,
            grid_spec=pltpu.PrefetchScalarGridSpec(
                num_scalar_prefetch=0,
                grid=grid,
                in_specs=in_specs,
                out_specs=out_spec,
            ),
            compiler_params=pltpu.CompilerParams(
                dimension_semantics=("parallel",),   # megacore split on v7x
                vmem_limit_bytes=_VMEM_LIMIT_BYTES,
            ),
            cost_estimate=cost,
        )(*args)
        return out if use_3d else out.reshape(B, C, L)

    try:
        return _run(single_buffer_residents=True)
    except Exception:
        # pl.Buffered(1) not supported on this jax build -> default buffering.
        return _run(single_buffer_residents=False)


def se_block_ref(x, w1, w2):
    # pure-JAX reference of the PyTorch forward
    y = jnp.mean(x, axis=-1)                 # (B, C)
    h = jnp.maximum(y @ w1.T, 0.0)           # (B, H)
    s = jax.nn.sigmoid(h @ w2.T)             # (B, C)
    return x * s[:, :, None]


if __name__ == "__main__":
    key = jax.random.PRNGKey(0)
    kx1, kx2, k1, k2 = jax.random.split(key, 4)

    # SEBlock(channel=32, reduction=16) -> hidden = 2
    C, reduction = 32, 16
    H = C // reduction
    w1 = jax.random.normal(k1, (H, C), dtype=jnp.float32) * 0.1  # (out, in)
    w2 = jax.random.normal(k2, (C, H), dtype=jnp.float32) * 0.1

    # 1) small-L fallback path (flattened lane-dense slab)
    B1, L1 = 2, 16
    x1 = jax.random.normal(kx1, (B1, C, L1), dtype=jnp.float32)
    out1 = jax.block_until_ready(se_block(x1, w1, w2))
    ref1 = se_block_ref(x1, w1, w2)
    assert out1.shape == (B1, C, L1)
    assert jnp.allclose(out1, ref1, atol=1e-5, rtol=1e-5), "flat path mismatch"

    # 2) primary 3-D path (L multiple of 128, multi-step grid)
    B2, L2 = 16, 128
    x2 = jax.random.normal(kx2, (B2, C, L2), dtype=jnp.float32)
    out2 = jax.block_until_ready(se_block(x2, w1, w2))
    ref2 = se_block_ref(x2, w1, w2)
    assert out2.shape == (B2, C, L2)
    assert jnp.allclose(out2, ref2, atol=1e-5, rtol=1e-5), "3d path mismatch"

    print("KERNEL_OK")
</pallas_src>

<mosaic_0001>
module attributes {stable_mosaic.version = 11 : i64} {
  func.func @_se_kernel_flat(%arg0: i32, %arg1: memref<2x512xf32, #tpu.memory_space<vmem>>, %arg2: memref<32x2xf32, #tpu.memory_space<vmem>>, %arg3: memref<2x32xf32, #tpu.memory_space<vmem>>, %arg4: memref<512x32xf32, #tpu.memory_space<vmem>>, %arg5: memref<32x512xf32, #tpu.memory_space<vmem>>, %arg6: memref<2x512xf32, #tpu.memory_space<vmem>>) attributes {dimension_semantics = [#tpu.dimension_semantics<parallel>], iteration_bounds = array<i64: 1>, scalar_prefetch = 0 : i64, scratch_operands = 0 : i64, tpu.core_type = #tpu.core_type<tc>, window_params = [{transform_indices = @transform_0, window_bounds = array<i64: 2, 512>}, {pipeline_mode = #tpu.pipeline_mode<synchronous>, transform_indices = @transform_1, window_bounds = array<i64: 32, 2>}, {pipeline_mode = #tpu.pipeline_mode<synchronous>, transform_indices = @transform_2, window_bounds = array<i64: 2, 32>}, {pipeline_mode = #tpu.pipeline_mode<synchronous>, transform_indices = @transform_3, window_bounds = array<i64: 512, 32>}, {pipeline_mode = #tpu.pipeline_mode<synchronous>, transform_indices = @transform_4, window_bounds = array<i64: 32, 512>}, {transform_indices = @transform_5, window_bounds = array<i64: 2, 512>}]} {
    %c0 = arith.constant 0 : index
    %c0_0 = arith.constant 0 : index
    %0 = vector.load %arg1[%c0, %c0_0] : memref<2x512xf32, #tpu.memory_space<vmem>>, vector<2x512xf32>
    %c0_1 = arith.constant 0 : index
    %c0_2 = arith.constant 0 : index
    %1 = vector.load %arg4[%c0_1, %c0_2] : memref<512x32xf32, #tpu.memory_space<vmem>>, vector<512x32xf32>
    %cst = arith.constant dense<0.000000e+00> : vector<2x32xf32>
    %2 = tpu.matmul %0, %1, %cst {dimension_numbers = #tpu.dot_dimension_numbers<[1], [0], [0], [1], [0, 0, 1, 1], [], []>} : vector<2x512xf32>, vector<512x32xf32>, vector<2x32xf32> -> vector<2x32xf32>
    %cst_3 = arith.constant 6.250000e-02 : f32
    %3 = vector.broadcast %cst_3 : f32 to vector<2x32xf32>
    %4 = arith.mulf %2, %3 : vector<2x32xf32>
    %c0_4 = arith.constant 0 : index
    %c0_5 = arith.constant 0 : index
    %5 = vector.load %arg2[%c0_4, %c0_5] : memref<32x2xf32, #tpu.memory_space<vmem>>, vector<32x2xf32>
    %cst_6 = arith.constant dense<0.000000e+00> : vector<2x2xf32>
    %6 = tpu.matmul %4, %5, %cst_6 {dimension_numbers = #tpu.dot_dimension_numbers<[1], [0], [0], [1], [0, 0, 1, 1], [], []>} : vector<2x32xf32>, vector<32x2xf32>, vector<2x2xf32> -> vector<2x2xf32>
    %cst_7 = arith.constant 0.000000e+00 : f32
    %7 = vector.broadcast %cst_7 : f32 to vector<2x2xf32>
    %8 = arith.maximumf %6, %7 : vector<2x2xf32>
    %c0_8 = arith.constant 0 : index
    %c0_9 = arith.constant 0 : index
    %9 = vector.load %arg3[%c0_8, %c0_9] : memref<2x32xf32, #tpu.memory_space<vmem>>, vector<2x32xf32>
    %cst_10 = arith.constant dense<0.000000e+00> : vector<2x32xf32>
    %10 = tpu.matmul %8, %9, %cst_10 {dimension_numbers = #tpu.dot_dimension_numbers<[1], [0], [0], [1], [0, 0, 1, 1], [], []>} : vector<2x2xf32>, vector<2x32xf32>, vector<2x32xf32> -> vector<2x32xf32>
    %11 = arith.negf %10 : vector<2x32xf32>
    %12 = math.exp %11 : vector<2x32xf32>
    %cst_11 = arith.constant 1.000000e+00 : f32
    %13 = vector.broadcast %cst_11 : f32 to vector<2x32xf32>
    %14 = arith.addf %13, %12 : vector<2x32xf32>
    %15 = arith.divf %13, %14 : vector<2x32xf32>
    %c0_12 = arith.constant 0 : index
    %c0_13 = arith.constant 0 : index
    %16 = vector.load %arg5[%c0_12, %c0_13] : memref<32x512xf32, #tpu.memory_space<vmem>>, vector<32x512xf32>
    %cst_14 = arith.constant dense<0.000000e+00> : vector<2x512xf32>
    %17 = tpu.matmul %15, %16, %cst_14 {dimension_numbers = #tpu.dot_dimension_numbers<[1], [0], [0], [1], [0, 0, 1, 1], [], []>} : vector<2x32xf32>, vector<32x512xf32>, vector<2x512xf32> -> vector<2x512xf32>
    %18 = arith.mulf %0, %17 : vector<2x512xf32>
    %c0_15 = arith.constant 0 : index
    %c0_16 = arith.constant 0 : index
    %19 = vector.load %arg6[%c0_15, %c0_16] : memref<2x512xf32, #tpu.memory_space<vmem>>, vector<2x512xf32>
    tpu.vector_store %arg6[%c0_15, %c0_16], %18 {strides = array<i32>} : memref<2x512xf32, #tpu.memory_space<vmem>>, vector<2x512xf32>,
    return
  }
  func.func @transform_0(%arg0: i32) -> (i32, i32) {
    %c0_i32 = arith.constant 0 : i32
    %c0_i32_0 = arith.constant 0 : i32
    return %arg0, %c0_i32 : i32, i32
  }
  func.func @transform_1(%arg0: i32) -> (i32, i32) {
    %c0_i32 = arith.constant 0 : i32
    %c0_i32_0 = arith.constant 0 : i32
    %c0_i32_1 = arith.constant 0 : i32
    return %c0_i32, %c0_i32_0 : i32, i32
  }
  func.func @transform_2(%arg0: i32) -> (i32, i32) {
    %c0_i32 = arith.constant 0 : i32
    %c0_i32_0 = arith.constant 0 : i32
    %c0_i32_1 = arith.constant 0 : i32
    return %c0_i32, %c0_i32_0 : i32, i32
  }
  func.func @transform_3(%arg0: i32) -> (i32, i32) {
    %c0_i32 = arith.constant 0 : i32
    %c0_i32_0 = arith.constant 0 : i32
    %c0_i32_1 = arith.constant 0 : i32
    return %c0_i32, %c0_i32_0 : i32, i32
  }
  func.func @transform_4(%arg0: i32) -> (i32, i32) {
    %c0_i32 = arith.constant 0 : i32
    %c0_i32_0 = arith.constant 0 : i32
    %c0_i32_1 = arith.constant 0 : i32
    return %c0_i32, %c0_i32_0 : i32, i32
  }
  func.func @transform_5(%arg0: i32) -> (i32, i32) {
    %c0_i32 = arith.constant 0 : i32
    %c0_i32_0 = arith.constant 0 : i32
    return %arg0, %c0_i32 : i32, i32
  }
}

module attributes {stable_mosaic.version = 11 : i64} {
  func.func @_se_kernel_flat(%arg0: i32, %arg1: memref<2x512xf32, #tpu.memory_space<vmem>>, %arg2: memref<32x2xf32, #tpu.memory_space<vmem>>, %arg3: memref<2x32xf32, #tpu.memory_space<vmem>>, %arg4: memref<512x32xf32, #tpu.memory_space<vmem>>, %arg5: memref<32x512xf32, #tpu.memory_space<vmem>>, %arg6: memref<2x512xf32, #tpu.memory_space<vmem>>) attributes {dimension_semantics = [#tpu.dimension_semantics<parallel>], iteration_bounds = array<i64: 1>, scalar_prefetch = 0 : i64, scratch_operands = 0 : i64, tpu.core_type = #tpu.core_type<tc>, window_params = [{transform_indices = @transform_0, window_bounds = array<i64: 2, 512>}, {pipeline_mode = #tpu.pipeline_mode<synchronous>, transform_indices = @transform_1, window_bounds = array<i64: 32, 2>}, {pipeline_mode = #tpu.pipeline_mode<synchronous>, transform_indices = @transform_2, window_bounds = array<i64: 2, 32>}, {pipeline_mode = #tpu.pipeline_mode<synchronous>, transform_indices = @transform_3, window_bounds = array<i64: 512, 32>}, {pipeline_mode = #tpu.pipeline_mode<synchronous>, transform_indices = @transform_4, window_bounds = array<i64: 32, 512>}, {transform_indices = @transform_5, window_bounds = array<i64: 2, 512>}]} {
    %c0 = arith.constant 0 : index
    %c0_0 = arith.constant 0 : index
    %0 = vector.load %arg1[%c0, %c0_0] : memref<2x512xf32, #tpu.memory_space<vmem>>, vector<2x512xf32>
    %c0_1 = arith.constant 0 : index
    %c0_2 = arith.constant 0 : index
    %1 = vector.load %arg4[%c0_1, %c0_2] : memref<512x32xf32, #tpu.memory_space<vmem>>, vector<512x32xf32>
    %cst = arith.constant dense<0.000000e+00> : vector<2x32xf32>
    %2 = tpu.matmul %0, %1, %cst {dimension_numbers = #tpu.dot_dimension_numbers<[1], [0], [0], [1], [0, 0, 1, 1], [], []>} : vector<2x512xf32>, vector<512x32xf32>, vector<2x32xf32> -> vector<2x32xf32>
    %cst_3 = arith.constant 6.250000e-02 : f32
    %3 = vector.broadcast %cst_3 : f32 to vector<2x32xf32>
    %4 = arith.mulf %2, %3 : vector<2x32xf32>
    %c0_4 = arith.constant 0 : index
    %c0_5 = arith.constant 0 : index
    %5 = vector.load %arg2[%c0_4, %c0_5] : memref<32x2xf32, #tpu.memory_space<vmem>>, vector<32x2xf32>
    %cst_6 = arith.constant dense<0.000000e+00> : vector<2x2xf32>
    %6 = tpu.matmul %4, %5, %cst_6 {dimension_numbers = #tpu.dot_dimension_numbers<[1], [0], [0], [1], [0, 0, 1, 1], [], []>} : vector<2x32xf32>, vector<32x2xf32>, vector<2x2xf32> -> vector<2x2xf32>
    %cst_7 = arith.constant 0.000000e+00 : f32
    %7 = vector.broadcast %cst_7 : f32 to vector<2x2xf32>
    %8 = arith.maximumf %6, %7 : vector<2x2xf32>
    %c0_8 = arith.constant 0 : index
    %c0_9 = arith.constant 0 : index
    %9 = vector.load %arg3[%c0_8, %c0_9] : memref<2x32xf32, #tpu.memory_space<vmem>>, vector<2x32xf32>
    %cst_10 = arith.constant dense<0.000000e+00> : vector<2x32xf32>
    %10 = tpu.matmul %8, %9, %cst_10 {dimension_numbers = #tpu.dot_dimension_numbers<[1], [0], [0], [1], [0, 0, 1, 1], [], []>} : vector<2x2xf32>, vector<2x32xf32>, vector<2x32xf32> -> vector<2x32xf32>
    %11 = arith.negf %10 : vector<2x32xf32>
    %12 = math.exp %11 : vector<2x32xf32>
    %cst_11 = arith.constant 1.000000e+00 : f32
    %13 = vector.broadcast %cst_11 : f32 to vector<2x32xf32>
    %14 = arith.addf %13, %12 : vector<2x32xf32>
    %15 = arith.divf %13, %14 : vector<2x32xf32>
    %c0_12 = arith.constant 0 : index
    %c0_13 = arith.constant 0 : index
    %16 = vector.load %arg5[%c0_12, %c0_13] : memref<32x512xf32, #tpu.memory_space<vmem>>, vector<32x512xf32>
    %cst_14 = arith.constant dense<0.000000e+00> : vector<2x512xf32>
    %17 = tpu.matmul %15, %16, %cst_14 {dimension_numbers = #tpu.dot_dimension_numbers<[1], [0], [0], [1], [0, 0, 1, 1], [], []>} : vector<2x32xf32>, vector<32x512xf32>, vector<2x512xf32> -> vector<2x512xf32>
    %18 = arith.mulf %0, %17 : vector<2x512xf32>
    %c0_15 = arith.constant 0 : index
    %c0_16 = arith.constant 0 : index
    %19 = vector.load %arg6[%c0_15, %c0_16] : memref<2x512xf32, #tpu.memory_space<vmem>>, vector<2x512xf32>
    tpu.vector_store %arg6[%c0_15, %c0_16], %18 {strides = array<i32>} : memref<2x512xf32, #tpu.memory_space<vmem>>, vector<2x512xf32>,
    return
  }
  func.func @transform_0(%arg0: i32) -> (i32, i32) {
    %c0_i32 = arith.constant 0 : i32
    %c0_i32_0 = arith.constant 0 : i32
    return %arg0, %c0_i32 : i32, i32
  }
  func.func @transform_1(%arg0: i32) -> (i32, i32) {
    %c0_i32 = arith.constant 0 : i32
    %c0_i32_0 = arith.constant 0 : i32
    %c0_i32_1 = arith.constant 0 : i32
    return %c0_i32, %c0_i32_0 : i32, i32
  }
  func.func @transform_2(%arg0: i32) -> (i32, i32) {
    %c0_i32 = arith.constant 0 : i32
    %c0_i32_0 = arith.constant 0 : i32
    %c0_i32_1 = arith.constant 0 : i32
    return %c0_i32, %c0_i32_0 : i32, i32
  }
  func.func @transform_3(%arg0: i32) -> (i32, i32) {
    %c0_i32 = arith.constant 0 : i32
    %c0_i32_0 = arith.constant 0 : i32
    %c0_i32_1 = arith.constant 0 : i32
    return %c0_i32, %c0_i32_0 : i32, i32
  }
  func.func @transform_4(%arg0: i32) -> (i32, i32) {
    %c0_i32 = arith.constant 0 : i32
    %c0_i32_0 = arith.constant 0 : i32
    %c0_i32_1 = arith.constant 0 : i32
    return %c0_i32, %c0_i32_0 : i32, i32
  }
  func.func @transform_5(%arg0: i32) -> (i32, i32) {
    %c0_i32 = arith.constant 0 : i32
    %c0_i32_0 = arith.constant 0 : i32
    return %arg0, %c0_i32 : i32, i32
  }
}

</mosaic_0001>

<llo_original>
// kernel: tpu_custom_call.1
$region0: #{tpu_custom_call.1}
  #allocation0 [shape = 'u32[]', space=smem, size = 0x4, offset = 0x4, fixed_abs, tag = 'smem constant byte address 0x4 - core index']
  #allocation1 [shape = 'u32[144,128]{1,0:T(1,128)}', space=vmem, size = 0x12000, scoped, tag = 'internal scratch']
  %s0 = inlined_call_operand.vmem [shape: f32[2,512], index: 0, kind: input, shape index: {}]
  %s1 = inlined_call_operand.vmem [shape: f32[32,2], index: 1, kind: input, shape index: {}]
  %s2 = inlined_call_operand.vmem [shape: f32[2,32], index: 2, kind: input, shape index: {}]
  %s3 = inlined_call_operand.vmem [shape: f32[512,32], index: 3, kind: input, shape index: {}]
  %s4 = inlined_call_operand.vmem [shape: f32[32,512], index: 4, kind: input, shape index: {}]
  %s5 = inlined_call_operand.hbm [shape: f32[2,512], index: 5, kind: output, shape index: {}]
  %s6 = sld [smem:[#allocation0]]
  $region30: #{tpu_custom_call.1} parent=0
    _
  %s8 = ssub.s32 1, %s6
  %s9 = scalar_select 0, %s8, %s6
  $region1: #{tpu_custom_call.1} parent=0
    #allocation2 [shape = 'u8[4096]{0}', space=vmem, size = 0x1000, scoped, tag = 'output window, operand 0, single buffered']
    #allocation3 [shape = 's32[1]{0}', space=sflag, size = 0x4, scoped, tag = 'scoped memory for tpu_custom_call.1']
    %10 = vsyncpa [#allocation3], 0
    // Predicated region
    $region2: #{tpu_custom_call.1} parent=1 // pred_check
      _
    $region3: #{tpu_custom_call.1} parent=1 // pred_check_branch
      %12 = sbr.rel (0) target = $region5
    $region4: #{tpu_custom_call.1} parent=1 // pred_region
      _
    $region5: #{tpu_custom_call.1} parent=1 // pred_fallthru
      _
    // Predicated region
    $region6: #{tpu_custom_call.1} parent=1 // pred_check
      _
    $region7: #{tpu_custom_call.1} parent=1 // pred_check_branch
      %14 = sbr.rel (0) target = $region9
    $region8: #{tpu_custom_call.1} parent=1 // pred_region
      _
    $region9: #{tpu_custom_call.1} parent=1 // pred_fallthru
      _
    // Predicated region
    $region10: #{tpu_custom_call.1} parent=1 // pred_check
      _
    $region11: #{tpu_custom_call.1} parent=1 // pred_check_branch
      %16 = sbr.rel (0) target = $region13
    $region12: #{tpu_custom_call.1} parent=1 // pred_region
      _
    $region13: #{tpu_custom_call.1} parent=1 // pred_fallthru
      _
    // Predicated region
    $region14: #{tpu_custom_call.1} parent=1 // pred_check
      _
    $region15: #{tpu_custom_call.1} parent=1 // pred_check_branch
      %18 = sbr.rel (0) target = $region17
    $region16: #{tpu_custom_call.1} parent=1 // pred_region
      _
    $region17: #{tpu_custom_call.1} parent=1 // pred_fallthru
      _
    // Predicated region
    $region18: #{tpu_custom_call.1} parent=1 // pred_check
      _
    $region19: #{tpu_custom_call.1} parent=1 // pred_check_branch
      %20 = sbr.rel (0) target = $region21
    $region20: #{tpu_custom_call.1} parent=1 // pred_region
      _
    $region21: #{tpu_custom_call.1} parent=1 // pred_fallthru
      _
    %v21 = vld [vmem:[%s0] sm:$0xff]
    %v22 = vld [vmem:[%s3] sm:$0xff]
    %v23 = vld [vmem:[%s3 + $0x8] sm:$0xff]
    %v24 = vld [vmem:[%s3 + $0x10] sm:$0xff]
    %v25 = vld [vmem:[%s3 + $0x18] sm:$0xff]
    %v26 = vld [vmem:[%s3 + $0x20] sm:$0xff]
    %v27 = vld [vmem:[%s3 + $0x28] sm:$0xff]
    %v28 = vld [vmem:[%s3 + $0x30] sm:$0xff]
    %v29 = vld [vmem:[%s3 + $0x38] sm:$0xff]
    %v30 = vld [vmem:[%s3 + $0x40] sm:$0xff]
    %v31 = vld [vmem:[%s3 + $0x48] sm:$0xff]
    %v32 = vld [vmem:[%s3 + $0x50] sm:$0xff]
    %v33 = vld [vmem:[%s3 + $0x58] sm:$0xff]
    %v34 = vld [vmem:[%s3 + $0x60] sm:$0xff]
    %v35 = vld [vmem:[%s3 + $0x68] sm:$0xff]
    %v36 = vld [vmem:[%s3 + $0x70] sm:$0xff]
    %v37 = vld [vmem:[%s3 + $0x78] sm:$0xff]
    %v38 = vld [vmem:[%s3 + $0x80] sm:$0xff]
    %v39 = vld [vmem:[%s3 + $0x88] sm:$0xff]
    %v40 = vld [vmem:[%s3 + $0x90] sm:$0xff]
    %v41 = vld [vmem:[%s3 + $0x98] sm:$0xff]
    %v42 = vld [vmem:[%s3 + $0xa0] sm:$0xff]
    %v43 = vld [vmem:[%s3 + $0xa8] sm:$0xff]
    %v44 = vld [vmem:[%s3 + $0xb0] sm:$0xff]
    %v45 = vld [vmem:[%s3 + $0xb8] sm:$0xff]
    %v46 = vld [vmem:[%s3 + $0xc0] sm:$0xff]
    %v47 = vld [vmem:[%s3 + $0xc8] sm:$0xff]
    %v48 = vld [vmem:[%s3 + $0xd0] sm:$0xff]
    %v49 = vld [vmem:[%s3 + $0xd8] sm:$0xff]
    %v50 = vld [vmem:[%s3 + $0xe0] sm:$0xff]
    %v51 = vld [vmem:[%s3 + $0xe8] sm:$0xff]
    %v52 = vld [vmem:[%s3 + $0xf0] sm:$0xff]
    %v53 = vld [vmem:[%s3 + $0xf8] sm:$0xff]
    %v54 = vld [vmem:[%s3 + $0x100] sm:$0xff]
    %v55 = vld [vmem:[%s3 + $0x108] sm:$0xff]
    %v56 = vld [vmem:[%s3 + $0x110] sm:$0xff]
    %v57 = vld [vmem:[%s3 + $0x118] sm:$0xff]
    %v58 = vld [vmem:[%s3 + $0x120] sm:$0xff]
    %v59 = vld [vmem:[%s3 + $0x128] sm:$0xff]
    %v60 = vld [vmem:[%s3 + $0x130] sm:$0xff]
    %v61 = vld [vmem:[%s3 + $0x138] sm:$0xff]
    %v62 = vld [vmem:[%s3 + $0x140] sm:$0xff]
    %v63 = vld [vmem:[%s3 + $0x148] sm:$0xff]
    %v64 = vld [vmem:[%s3 + $0x150] sm:$0xff]
    %v65 = vld [vmem:[%s3 + $0x158] sm:$0xff]
    %v66 = vld [vmem:[%s3 + $0x160] sm:$0xff]
    %v67 = vld [vmem:[%s3 + $0x168] sm:$0xff]
    %v68 = vld [vmem:[%s3 + $0x170] sm:$0xff]
    %v69 = vld [vmem:[%s3 + $0x178] sm:$0xff]
    %v70 = vld [vmem:[%s3 + $0x180] sm:$0xff]
    %v71 = vld [vmem:[%s3 + $0x188] sm:$0xff]
    %v72 = vld [vmem:[%s3 + $0x190] sm:$0xff]
    %v73 = vld [vmem:[%s3 + $0x198] sm:$0xff]
    %v74 = vld [vmem:[%s3 + $0x1a0] sm:$0xff]
    %v75 = vld [vmem:[%s3 + $0x1a8] sm:$0xff]
    %v76 = vld [vmem:[%s3 + $0x1b0] sm:$0xff]
    %v77 = vld [vmem:[%s3 + $0x1b8] sm:$0xff]
    %v78 = vld [vmem:[%s3 + $0x1c0] sm:$0xff]
    %v79 = vld [vmem:[%s3 + $0x1c8] sm:$0xff]
    %v80 = vld [vmem:[%s3 + $0x1d0] sm:$0xff]
    %v81 = vld [vmem:[%s3 + $0x1d8] sm:$0xff]
    %v82 = vld [vmem:[%s3 + $0x1e0] sm:$0xff]
    %v83 = vld [vmem:[%s3 + $0x1e8] sm:$0xff]
    %v84 = vld [vmem:[%s3 + $0x1f0] sm:$0xff]
    %v85 = vld [vmem:[%s3 + $0x1f8] sm:$0xff]
    %v87 = vcombine.high %v21, %v21
    %v89 = vunpack.c.l.s4 1983009808
    %v90 = vunpack.c.0.s8 %v89
    %v91 = vlaneseq
    %v92 = vshrl.u32 %v91, 7
    %v93 = vsub.s32 %v90, %v92
    %v94 = vrot.slane %v21, %v93
    %v96 = vunpack.c.l.s4 1983009808
    %v97 = vunpack.c.0.s8 %v96
    %v98 = vlaneseq
    %v99 = vshrl.u32 %v98, 7
    %v100 = vsub.s32 %v97, %v99
    %v101 = vrot.slane %v87, %v100
    %v102 = vcombine.high %v94, %v94
    %v103 = vcombine.high %v101, %v101
    %108 = vmatprep.subr.mxu0 0.0
    %109 = vmatpush1.msra.mxu0 %v37
    %110 = vmatprep.subr.mxu0 0.0
    %111 = vmatpush1.msra.mxu0 %v36
    %112 = vmatprep.subr.mxu0 0.0
    %113 = vmatpush1.msra.mxu0 %v35
    %114 = vmatprep.subr.mxu0 0.0
    %115 = vmatpush1.msra.mxu0 %v34
    %116 = vmatprep.subr.mxu0 0.0
    %117 = vmatpush1.msra.mxu0 %v33
    %118 = vmatprep.subr.mxu0 0.0
    %119 = vmatpush1.msra.mxu0 %v32
    %120 = vmatprep.subr.mxu0 0.0
    %121 = vmatpush1.msra.mxu0 %v31
    %122 = vmatprep.subr.mxu0 0.0
    %123 = vmatpush1.msra.mxu0 %v30
    %124 = vmatprep.subr.mxu0 0.0
    %125 = vmatpush1.msra.mxu0 %v29
    %126 = vmatprep.subr.mxu0 0.0
    %127 = vmatpush1.msra.mxu0 %v28
    %128 = vmatprep.subr.mxu0 0.0
    %129 = vmatpush1.msra.mxu0 %v27
    %130 = vmatprep.subr.mxu0 0.0
    %131 = vmatpush1.msra.mxu0 %v26
    %132 = vmatprep.subr.mxu0 0.0
    %133 = vmatpush1.msra.mxu0 %v25
    %134 = vmatprep.subr.mxu0 0.0
    %135 = vmatpush1.msra.mxu0 %v24
    %136 = vmatprep.subr.mxu0 0.0
    %137 = vmatpush1.msra.mxu0 %v23
    %138 = vmatprep.subr.mxu0 0.0
    %139 = vmatpush1.msra.mxu0 %v22
    %140 = vmatprep.subr.mxu0 0.0
    %141 = vmatpush2.msra.mxu0 %v53
    %142 = vmatprep.subr.mxu0 0.0
    %143 = vmatpush2.msra.mxu0 %v52
    %144 = vmatprep.subr.mxu0 0.0
    %145 = vmatpush2.msra.mxu0 %v51
    %146 = vmatprep.subr.mxu0 0.0
    %147 = vmatpush2.msra.mxu0 %v50
    %148 = vmatprep.subr.mxu0 0.0
    %149 = vmatpush2.msra.mxu0 %v49
    %150 = vmatprep.subr.mxu0 0.0
    %151 = vmatpush2.msra.mxu0 %v48
    %152 = vmatprep.subr.mxu0 0.0
    %153 = vmatpush2.msra.mxu0 %v47
    %154 = vmatprep.subr.mxu0 0.0
    %155 = vmatpush2.msra.mxu0 %v46
    %156 = vmatprep.subr.mxu0 0.0
    %157 = vmatpush2.msra.mxu0 %v45
    %158 = vmatprep.subr.mxu0 0.0
    %159 = vmatpush2.msra.mxu0 %v44
    %160 = vmatprep.subr.mxu0 0.0
    %161 = vmatpush2.msra.mxu0 %v43
    %162 = vmatprep.subr.mxu0 0.0
    %163 = vmatpush2.msra.mxu0 %v42
    %164 = vmatprep.subr.mxu0 0.0
    %165 = vmatpush2.msra.mxu0 %v41
    %166 = vmatprep.subr.mxu0 0.0
    %167 = vmatpush2.msra.mxu0 %v40
    %168 = vmatprep.subr.mxu0 0.0
    %169 = vmatpush2.msra.mxu0 %v39
    %170 = vmatprep.subr.mxu0 0.0
    %171 = vmatpush2.msra.mxu0 %v38
    %172 = vmatprep.mubr.f32.mxu0 %v102
    %173 = vmatmul.mubr.f32.gmra.mxu0 %v94
    %v174 = vpop.f32.mrf.mxu0
    %v175 = vadd.f32 0.0, %v174
    %v176 = vpop.f32.mrf.mxu0
    %177 = vdwg.mxu0
    %178 = vmatprep.subr.mxu0 0.0
    %179 = vmatpush1.msra.mxu0 %v69
    %180 = vmatprep.subr.mxu0 0.0
    %181 = vmatpush1.msra.mxu0 %v68
    %182 = vmatprep.subr.mxu0 0.0
    %183 = vmatpush1.msra.mxu0 %v67
    %184 = vmatprep.subr.mxu0 0.0
    %185 = vmatpush1.msra.mxu0 %v66
    %186 = vmatprep.subr.mxu0 0.0
    %187 = vmatpush1.msra.mxu0 %v65
    %188 = vmatprep.subr.mxu0 0.0
    %189 = vmatpush1.msra.mxu0 %v64
    %190 = vmatprep.subr.mxu0 0.0
    %191 = vmatpush1.msra.mxu0 %v63
    %192 = vmatprep.subr.mxu0 0.0
    %193 = vmatpush1.msra.mxu0 %v62
    %194 = vmatprep.subr.mxu0 0.0
    %195 = vmatpush1.msra.mxu0 %v61
    %196 = vmatprep.subr.mxu0 0.0
    %197 = vmatpush1.msra.mxu0 %v60
    %198 = vmatprep.subr.mxu0 0.0
    %199 = vmatpush1.msra.mxu0 %v59
    %200 = vmatprep.subr.mxu0 0.0
    %201 = vmatpush1.msra.mxu0 %v58
    %202 = vmatprep.subr.mxu0 0.0
    %203 = vmatpush1.msra.mxu0 %v57
    %204 = vmatprep.subr.mxu0 0.0
    %205 = vmatpush1.msra.mxu0 %v56
    %206 = vmatprep.subr.mxu0 0.0
    %207 = vmatpush1.msra.mxu0 %v55
    %208 = vmatprep.subr.mxu0 0.0
    %209 = vmatpush1.msra.mxu0 %v54
    %210 = vmatprep.subr.mxu0 0.0
    %211 = vmatpush2.msra.mxu0 %v85
    %212 = vmatprep.subr.mxu0 0.0
    %213 = vmatpush2.msra.mxu0 %v84
    %214 = vmatprep.subr.mxu0 0.0
    %215 = vmatpush2.msra.mxu0 %v83
    %216 = vmatprep.subr.mxu0 0.0
    %217 = vmatpush2.msra.mxu0 %v82
    %218 = vmatprep.subr.mxu0 0.0
    %219 = vmatpush2.msra.mxu0 %v81
    %220 = vmatprep.subr.mxu0 0.0
    %221 = vmatpush2.msra.mxu0 %v80
    %222 = vmatprep.subr.mxu0 0.0
    %223 = vmatpush2.msra.mxu0 %v79
    %224 = vmatprep.subr.mxu0 0.0
    %225 = vmatpush2.msra.mxu0 %v78
    %226 = vmatprep.subr.mxu0 0.0
    %227 = vmatpush2.msra.mxu0 %v77
    %228 = vmatprep.subr.mxu0 0.0
    %229 = vmatpush2.msra.mxu0 %v76
    %230 = vmatprep.subr.mxu0 0.0
    %231 = vmatpush2.msra.mxu0 %v75
    %232 = vmatprep.subr.mxu0 0.0
    %233 = vmatpush2.msra.mxu0 %v74
    %234 = vmatprep.subr.mxu0 0.0
    %235 = vmatpush2.msra.mxu0 %v73
    %236 = vmatprep.subr.mxu0 0.0
    %237 = vmatpush2.msra.mxu0 %v72
    %238 = vmatprep.subr.mxu0 0.0
    %239 = vmatpush2.msra.mxu0 %v71
    %240 = vmatprep.subr.mxu0 0.0
    %241 = vmatpush2.msra.mxu0 %v70
    %242 = vmatprep.mubr.f32.mxu0 %v103
    %243 = vmatmul.mubr.f32.gmra.mxu0 %v101
    %v244 = vpop.f32.mrf.mxu0
    %v245 = vadd.f32 %v175, %v244
    %v246 = vpop.f32.mrf.mxu0
    %247 = vdwg.mxu0
    %v248 = vmul.f32 %v245, 0.0625
    %v249 = vld [vmem:[%s1] sm:$0xff]
    %v250 = vld [vmem:[%s1 + $0x8] sm:$0xff]
    %v251 = vld [vmem:[%s1 + $0x10] sm:$0xff]
    %v252 = vld [vmem:[%s1 + $0x18] sm:$0xff]
    %vm253 = vcmask 261120
    %v255 = vsel %vm253, %v248, 0
    %257 = vmatprep.subr.mxu0 0.0
    %258 = vmatpush1.msra.mxu0 0.0
    %259 = vmatprep.subr.mxu0 0.0
    %260 = vmatpush1.msra.mxu0 0.0
    %261 = vmatprep.subr.mxu0 0.0
    %262 = vmatpush1.msra.mxu0 0.0
    %263 = vmatprep.subr.mxu0 0.0
    %264 = vmatpush1.msra.mxu0 0.0
    %265 = vmatprep.subr.mxu0 0.0
    %266 = vmatpush1.msra.mxu0 0.0
    %267 = vmatprep.subr.mxu0 0.0
    %268 = vmatpush1.msra.mxu0 0.0
    %269 = vmatprep.subr.mxu0 0.0
    %270 = vmatpush1.msra.mxu0 0.0
    %271 = vmatprep.subr.mxu0 0.0
    %272 = vmatpush1.msra.mxu0 0.0
    %273 = vmatprep.subr.mxu0 0.0
    %274 = vmatpush1.msra.mxu0 0.0
    %275 = vmatprep.subr.mxu0 0.0
    %276 = vmatpush1.msra.mxu0 0.0
    %277 = vmatprep.subr.mxu0 0.0
    %278 = vmatpush1.msra.mxu0 0.0
    %279 = vmatprep.subr.mxu0 0.0
    %280 = vmatpush1.msra.mxu0 0.0
    %281 = vmatprep.subr.mxu0 0.0
    %282 = vmatpush1.msra.mxu0 %v252
    %283 = vmatprep.subr.mxu0 0.0
    %284 = vmatpush1.msra.mxu0 %v251
    %285 = vmatprep.subr.mxu0 0.0
    %286 = vmatpush1.msra.mxu0 %v250
    %287 = vmatprep.subr.mxu0 0.0
    %288 = vmatpush1.msra.mxu0 %v249
    %289 = vmatprep.subr.mxu0 0.0
    %290 = vmatpush2.msra.mxu0 0.0
    %291 = vmatprep.subr.mxu0 0.0
    %292 = vmatpush2.msra.mxu0 0.0
    %293 = vmatprep.subr.mxu0 0.0
    %294 = vmatpush2.msra.mxu0 0.0
    %295 = vmatprep.subr.mxu0 0.0
    %296 = vmatpush2.msra.mxu0 0.0
    %297 = vmatprep.subr.mxu0 0.0
    %298 = vmatpush2.msra.mxu0 0.0
    %299 = vmatprep.subr.mxu0 0.0
    %300 = vmatpush2.msra.mxu0 0.0
    %301 = vmatprep.subr.mxu0 0.0
    %302 = vmatpush2.msra.mxu0 0.0
    %303 = vmatprep.subr.mxu0 0.0
    %304 = vmatpush2.msra.mxu0 0.0
    %305 = vmatprep.subr.mxu0 0.0
    %306 = vmatpush2.msra.mxu0 0.0
    %307 = vmatprep.subr.mxu0 0.0
    %308 = vmatpush2.msra.mxu0 0.0
    %309 = vmatprep.subr.mxu0 0.0
    %310 = vmatpush2.msra.mxu0 0.0
    %311 = vmatprep.subr.mxu0 0.0
    %312 = vmatpush2.msra.mxu0 0.0
    %313 = vmatprep.subr.mxu0 0.0
    %314 = vmatpush2.msra.mxu0 0.0
    %315 = vmatprep.subr.mxu0 0.0
    %316 = vmatpush2.msra.mxu0 0.0
    %317 = vmatprep.subr.mxu0 0.0
    %318 = vmatpush2.msra.mxu0 0.0
    %319 = vmatprep.subr.mxu0 0.0
    %320 = vmatpush2.msra.mxu0 0.0
    %321 = vmatprep.mubr.f32.mxu0 0.0
    %322 = vmatmul.mubr.f32.gmra.mxu0 %v255
    %v323 = vpop.f32.mrf.mxu0
    %v324 = vadd.f32 0.0, %v323
    %v325 = vpop.f32.mrf.mxu0
    %326 = vdwg.mxu0
    %v327 = vmax.f32 %v324, 0.0
    %v328 = vld [vmem:[%s2] sm:$0x3]
    %vm329 = vcmask 15360
    %v331 = vsel %vm329, %v327, 0
    %vm333 = vcmask 1041408
    %v335 = vsel %vm333, %v328, 0
    %337 = vmatprep.subr.mxu0 0.0
    %338 = vmatpush1.msra.mxu0 0.0
    %339 = vmatprep.subr.mxu0 0.0
    %340 = vmatpush1.msra.mxu0 0.0
    %341 = vmatprep.subr.mxu0 0.0
    %342 = vmatpush1.msra.mxu0 0.0
    %343 = vmatprep.subr.mxu0 0.0
    %344 = vmatpush1.msra.mxu0 0.0
    %345 = vmatprep.subr.mxu0 0.0
    %346 = vmatpush1.msra.mxu0 0.0
    %347 = vmatprep.subr.mxu0 0.0
    %348 = vmatpush1.msra.mxu0 0.0
    %349 = vmatprep.subr.mxu0 0.0
    %350 = vmatpush1.msra.mxu0 0.0
    %351 = vmatprep.subr.mxu0 0.0
    %352 = vmatpush1.msra.mxu0 0.0
    %353 = vmatprep.subr.mxu0 0.0
    %354 = vmatpush1.msra.mxu0 0.0
    %355 = vmatprep.subr.mxu0 0.0
    %356 = vmatpush1.msra.mxu0 0.0
    %357 = vmatprep.subr.mxu0 0.0
    %358 = vmatpush1.msra.mxu0 0.0
    %359 = vmatprep.subr.mxu0 0.0
    %360 = vmatpush1.msra.mxu0 0.0
    %361 = vmatprep.subr.mxu0 0.0
    %362 = vmatpush1.msra.mxu0 0.0
    %363 = vmatprep.subr.mxu0 0.0
    %364 = vmatpush1.msra.mxu0 0.0
    %365 = vmatprep.subr.mxu0 0.0
    %366 = vmatpush1.msra.mxu0 0.0
    %367 = vmatprep.subr.mxu0 0.0
    %368 = vmatpush1.msra.mxu0 %v335
    %369 = vmatprep.subr.mxu0 0.0
    %370 = vmatpush2.msra.mxu0 0.0
    %371 = vmatprep.subr.mxu0 0.0
    %372 = vmatpush2.msra.mxu0 0.0
    %373 = vmatprep.subr.mxu0 0.0
    %374 = vmatpush2.msra.mxu0 0.0
    %375 = vmatprep.subr.mxu0 0.0
    %376 = vmatpush2.msra.mxu0 0.0
    %377 = vmatprep.subr.mxu0 0.0
    %378 = vmatpush2.msra.mxu0 0.0
    %379 = vmatprep.subr.mxu0 0.0
    %380 = vmatpush2.msra.mxu0 0.0
    %381 = vmatprep.subr.mxu0 0.0
    %382 = vmatpush2.msra.mxu0 0.0
    %383 = vmatprep.subr.mxu0 0.0
    %384 = vmatpush2.msra.mxu0 0.0
    %385 = vmatprep.subr.mxu0 0.0
    %386 = vmatpush2.msra.mxu0 0.0
    %387 = vmatprep.subr.mxu0 0.0
    %388 = vmatpush2.msra.mxu0 0.0
    %389 = vmatprep.subr.mxu0 0.0
    %390 = vmatpush2.msra.mxu0 0.0
    %391 = vmatprep.subr.mxu0 0.0
    %392 = vmatpush2.msra.mxu0 0.0
    %393 = vmatprep.subr.mxu0 0.0
    %394 = vmatpush2.msra.mxu0 0.0
    %395 = vmatprep.subr.mxu0 0.0
    %396 = vmatpush2.msra.mxu0 0.0
    %397 = vmatprep.subr.mxu0 0.0
    %398 = vmatpush2.msra.mxu0 0.0
    %399 = vmatprep.subr.mxu0 0.0
    %400 = vmatpush2.msra.mxu0 0.0
    %401 = vmatprep.mubr.f32.mxu0 0.0
    %402 = vmatmul.mubr.f32.gmra.mxu0 %v331
    %v403 = vpop.f32.mrf.mxu0
    %v404 = vadd.f32 0.0, %v403
    %v405 = vpop.f32.mrf.mxu0
    %406 = vdwg.mxu0
    %v407 = vxor.u32 %v404, 2147483648
    %v408 = vmul.f32 %v407, 1.442695
    %v409 = vpow.pop %v408
    %v410 = vadd.f32 %v409, 1.0
    %v411 = vrcp.pop %v410
    %v412 = vmul.f32 1.0, %v411
    %v413 = vld [vmem:[%s4] sm:$0xff]
    %v414 = vld [vmem:[%s4 + $0x8] sm:$0xff]
    %v415 = vld [vmem:[%s4 + $0x10] sm:$0xff]
    %v416 = vld [vmem:[%s4 + $0x18] sm:$0xff]
    %v417 = vld [vmem:[%s4 + $0x20] sm:$0xff]
    %v418 = vld [vmem:[%s4 + $0x28] sm:$0xff]
    %v419 = vld [vmem:[%s4 + $0x30] sm:$0xff]
    %v420 = vld [vmem:[%s4 + $0x38] sm:$0xff]
    %v421 = vld [vmem:[%s4 + $0x40] sm:$0xff]
    %v422 = vld [vmem:[%s4 + $0x48] sm:$0xff]
    %v423 = vld [vmem:[%s4 + $0x50] sm:$0xff]
    %v424 = vld [vmem:[%s4 + $0x58] sm:$0xff]
    %v425 = vld [vmem:[%s4 + $0x60] sm:$0xff]
    %v426 = vld [vmem:[%s4 + $0x68] sm:$0xff]
    %v427 = vld [vmem:[%s4 + $0x70] sm:$0xff]
    %v428 = vld [vmem:[%s4 + $0x78] sm:$0xff]
    %v430 = vsel %vm253, %v412, 0
    %432 = vmatprep.subr.mxu0 0.0
    %433 = vmatpush1.msra.mxu0 0.0
    %434 = vmatprep.subr.mxu0 0.0
    %435 = vmatpush1.msra.mxu0 0.0
    %436 = vmatprep.subr.mxu0 0.0
    %437 = vmatpush1.msra.mxu0 0.0
    %438 = vmatprep.subr.mxu0 0.0
    %439 = vmatpush1.msra.mxu0 0.0
    %440 = vmatprep.subr.mxu0 0.0
    %441 = vmatpush1.msra.mxu0 0.0
    %442 = vmatprep.subr.mxu0 0.0
    %443 = vmatpush1.msra.mxu0 0.0
    %444 = vmatprep.subr.mxu0 0.0
    %445 = vmatpush1.msra.mxu0 0.0
    %446 = vmatprep.subr.mxu0 0.0
    %447 = vmatpush1.msra.mxu0 0.0
    %448 = vmatprep.subr.mxu0 0.0
    %449 = vmatpush1.msra.mxu0 0.0
    %450 = vmatprep.subr.mxu0 0.0
    %451 = vmatpush1.msra.mxu0 0.0
    %452 = vmatprep.subr.mxu0 0.0
    %453 = vmatpush1.msra.mxu0 0.0
    %454 = vmatprep.subr.mxu0 0.0
    %455 = vmatpush1.msra.mxu0 0.0
    %456 = vmatprep.subr.mxu0 %v426
    %457 = vmatpush1.msra.mxu0 %v425
    %458 = vmatprep.subr.mxu0 %v422
    %459 = vmatpush1.msra.mxu0 %v421
    %460 = vmatprep.subr.mxu0 %v418
    %461 = vmatpush1.msra.mxu0 %v417
    %462 = vmatprep.subr.mxu0 %v414
    %463 = vmatpush1.msra.mxu0 %v413
    %464 = vmatprep.subr.mxu0 0.0
    %465 = vmatpush2.msra.mxu0 0.0
    %466 = vmatprep.subr.mxu0 0.0
    %467 = vmatpush2.msra.mxu0 0.0
    %468 = vmatprep.subr.mxu0 0.0
    %469 = vmatpush2.msra.mxu0 0.0
    %470 = vmatprep.subr.mxu0 0.0
    %471 = vmatpush2.msra.mxu0 0.0
    %472 = vmatprep.subr.mxu0 0.0
    %473 = vmatpush2.msra.mxu0 0.0
    %474 = vmatprep.subr.mxu0 0.0
    %475 = vmatpush2.msra.mxu0 0.0
    %476 = vmatprep.subr.mxu0 0.0
    %477 = vmatpush2.msra.mxu0 0.0
    %478 = vmatprep.subr.mxu0 0.0
    %479 = vmatpush2.msra.mxu0 0.0
    %480 = vmatprep.subr.mxu0 0.0
    %481 = vmatpush2.msra.mxu0 0.0
    %482 = vmatprep.subr.mxu0 0.0
    %483 = vmatpush2.msra.mxu0 0.0
    %484 = vmatprep.subr.mxu0 0.0
    %485 = vmatpush2.msra.mxu0 0.0
    %486 = vmatprep.subr.mxu0 0.0
    %487 = vmatpush2.msra.mxu0 0.0
    %488 = vmatprep.subr.mxu0 0.0
    %489 = vmatpush2.msra.mxu0 0.0
    %490 = vmatprep.subr.mxu0 0.0
    %491 = vmatpush2.msra.mxu0 0.0
    %492 = vmatprep.subr.mxu0 0.0
    %493 = vmatpush2.msra.mxu0 0.0
    %494 = vmatprep.subr.mxu0 0.0
    %495 = vmatpush2.msra.mxu0 0.0
    %496 = vmatprep.mubr.f32.mxu0 0.0
    %497 = vmatmul.mubr.f32.gmra.mxu0 %v430
    %v498 = vpop.f32.mrf.mxu0
    %v499 = vadd.f32 0.0, %v498
    %v500 = vpop.f32.mrf.mxu0
    %v501 = vadd.f32 0.0, %v500
    %502 = vdwg.mxu0
    %503 = vmatprep.subr.mxu0 0.0
    %504 = vmatpush1.msra.mxu0 0.0
    %505 = vmatprep.subr.mxu0 0.0
    %506 = vmatpush1.msra.mxu0 0.0
    %507 = vmatprep.subr.mxu0 0.0
    %508 = vmatpush1.msra.mxu0 0.0
    %509 = vmatprep.subr.mxu0 0.0
    %510 = vmatpush1.msra.mxu0 0.0
    %511 = vmatprep.subr.mxu0 0.0
    %512 = vmatpush1.msra.mxu0 0.0
    %513 = vmatprep.subr.mxu0 0.0
    %514 = vmatpush1.msra.mxu0 0.0
    %515 = vmatprep.subr.mxu0 0.0
    %516 = vmatpush1.msra.mxu0 0.0
    %517 = vmatprep.subr.mxu0 0.0
    %518 = vmatpush1.msra.mxu0 0.0
    %519 = vmatprep.subr.mxu0 0.0
    %520 = vmatpush1.msra.mxu0 0.0
    %521 = vmatprep.subr.mxu0 0.0
    %522 = vmatpush1.msra.mxu0 0.0
    %523 = vmatprep.subr.mxu0 0.0
    %524 = vmatpush1.msra.mxu0 0.0
    %525 = vmatprep.subr.mxu0 0.0
    %526 = vmatpush1.msra.mxu0 0.0
    %527 = vmatprep.subr.mxu0 %v428
    %528 = vmatpush1.msra.mxu0 %v427
    %529 = vmatprep.subr.mxu0 %v424
    %530 = vmatpush1.msra.mxu0 %v423
    %531 = vmatprep.subr.mxu0 %v420
    %532 = vmatpush1.msra.mxu0 %v419
    %533 = vmatprep.subr.mxu0 %v416
    %534 = vmatpush1.msra.mxu0 %v415
    %535 = vmatprep.subr.mxu0 0.0
    %536 = vmatpush2.msra.mxu0 0.0
    %537 = vmatprep.subr.mxu0 0.0
    %538 = vmatpush2.msra.mxu0 0.0
    %539 = vmatprep.subr.mxu0 0.0
    %540 = vmatpush2.msra.mxu0 0.0
    %541 = vmatprep.subr.mxu0 0.0
    %542 = vmatpush2.msra.mxu0 0.0
    %543 = vmatprep.subr.mxu0 0.0
    %544 = vmatpush2.msra.mxu0 0.0
    %545 = vmatprep.subr.mxu0 0.0
    %546 = vmatpush2.msra.mxu0 0.0
    %547 = vmatprep.subr.mxu0 0.0
    %548 = vmatpush2.msra.mxu0 0.0
    %549 = vmatprep.subr.mxu0 0.0
    %550 = vmatpush2.msra.mxu0 0.0
    %551 = vmatprep.subr.mxu0 0.0
    %552 = vmatpush2.msra.mxu0 0.0
    %553 = vmatprep.subr.mxu0 0.0
    %554 = vmatpush2.msra.mxu0 0.0
    %555 = vmatprep.subr.mxu0 0.0
    %556 = vmatpush2.msra.mxu0 0.0
    %557 = vmatprep.subr.mxu0 0.0
    %558 = vmatpush2.msra.mxu0 0.0
    %559 = vmatprep.subr.mxu0 0.0
    %560 = vmatpush2.msra.mxu0 0.0
    %561 = vmatprep.subr.mxu0 0.0
    %562 = vmatpush2.msra.mxu0 0.0
    %563 = vmatprep.subr.mxu0 0.0
    %564 = vmatpush2.msra.mxu0 0.0
    %565 = vmatprep.subr.mxu0 0.0
    %566 = vmatpush2.msra.mxu0 0.0
    %567 = vmatprep.mubr.f32.mxu0 0.0
    %568 = vmatmul.mubr.f32.gmra.mxu0 %v430
    %v569 = vpop.f32.mrf.mxu0
    %v570 = vadd.f32 0.0, %v569
    %v571 = vpop.f32.mrf.mxu0
    %v572 = vadd.f32 0.0, %v571
    %573 = vdwg.mxu0
    %v578 = vcombine.low %v499, %v501
    %v579 = vcombine.low %v570, %v572
    %v581 = vunpack.c.l.s4 1983009808
    %v582 = vunpack.c.0.s8 %v581
    %v583 = vlaneseq
    %v584 = vshrl.u32 %v583, 7
    %v585 = vsub.s32 %v582, %v584
    %v586 = vrot.slane %v578, %v585
    %v588 = vunpack.c.l.s4 1983009808
    %v589 = vunpack.c.0.s8 %v588
    %v590 = vlaneseq
    %v591 = vshrl.u32 %v590, 7
    %v592 = vsub.s32 %v589, %v591
    %v593 = vrot.slane %v579, %v592
    %v594 = vcombine.low %v586, %v593
    %v596 = vmul.f32 %v21, %v594
    %597 = vst [vmem:[#allocation2] sm:$0xff] %v596
    // Predicated region
    $region22: #{tpu_custom_call.1} parent=1 // pred_check
      _
    $region23: #{tpu_custom_call.1} parent=1 // pred_check_branch
      %599 = sbr.rel (0) target = $region25
    $region24: #{tpu_custom_call.1} parent=1 // pred_region
      %s601 = ssub.s32 128, 128
      %602 = vsyncadd [#allocation3], %s601
      %s604 = sshll.u32 [#allocation2], 4
      %s605 = int_to_ptr.vmem [resolvable:$true] %s604
      %607 = dma.vmem_to_hbm [thread:$0]  %s605, 128, %s5, [#allocation3]
    $region25: #{tpu_custom_call.1} parent=1 // pred_fallthru
      _
    // Predicated region
    $region26: #{tpu_custom_call.1} parent=1 // pred_check
      _
    $region27: #{tpu_custom_call.1} parent=1 // pred_check_branch
      %609 = sbr.rel (0) target = $region29
    $region28: #{tpu_custom_call.1} parent=1 // pred_region
      %610 = dma.done [#allocation3], 128
    $region29: #{tpu_custom_call.1} parent=1 // pred_fallthru
      _
    %611 = vsyncpa [#allocation3], 1

// kernel: tpu_custom_call.1
$region0: #{tpu_custom_call.1}
  #allocation0 [shape = 'u32[]', space=smem, size = 0x4, offset = 0x4, fixed_abs, tag = 'smem constant byte address 0x4 - core index']
  #allocation1 [shape = 'u32[144,128]{1,0:T(1,128)}', space=vmem, size = 0x12000, scoped, tag = 'internal scratch']
  %s0 = inlined_call_operand.vmem [shape: f32[2,512], index: 0, kind: input, shape index: {}]
  %s1 = inlined_call_operand.vmem [shape: f32[32,2], index: 1, kind: input, shape index: {}]
  %s2 = inlined_call_operand.vmem [shape: f32[2,32], index: 2, kind: input, shape index: {}]
  %s3 = inlined_call_operand.vmem [shape: f32[512,32], index: 3, kind: input, shape index: {}]
  %s4 = inlined_call_operand.vmem [shape: f32[32,512], index: 4, kind: input, shape index: {}]
  %s5 = inlined_call_operand.hbm [shape: f32[2,512], index: 5, kind: output, shape index: {}]
  %s6 = sld [smem:[#allocation0]]
  $region30: #{tpu_custom_call.1} parent=0
    _
  %s8 = ssub.s32 1, %s6
  %s9 = scalar_select 0, %s8, %s6
  $region1: #{tpu_custom_call.1} parent=0
    #allocation2 [shape = 'u8[4096]{0}', space=vmem, size = 0x1000, scoped, tag = 'output window, operand 0, single buffered']
    #allocation3 [shape = 's32[1]{0}', space=sflag, size = 0x4, scoped, tag = 'scoped memory for tpu_custom_call.1']
    %10 = vsyncpa [#allocation3], 0
    // Predicated region
    $region2: #{tpu_custom_call.1} parent=1 // pred_check
      _
    $region3: #{tpu_custom_call.1} parent=1 // pred_check_branch
      %12 = sbr.rel (0) target = $region5
    $region4: #{tpu_custom_call.1} parent=1 // pred_region
      _
    $region5: #{tpu_custom_call.1} parent=1 // pred_fallthru
      _
    // Predicated region
    $region6: #{tpu_custom_call.1} parent=1 // pred_check
      _
    $region7: #{tpu_custom_call.1} parent=1 // pred_check_branch
      %14 = sbr.rel (0) target = $region9
    $region8: #{tpu_custom_call.1} parent=1 // pred_region
      _
    $region9: #{tpu_custom_call.1} parent=1 // pred_fallthru
      _
    // Predicated region
    $region10: #{tpu_custom_call.1} parent=1 // pred_check
      _
    $region11: #{tpu_custom_call.1} parent=1 // pred_check_branch
      %16 = sbr.rel (0) target = $region13
    $region12: #{tpu_custom_call.1} parent=1 // pred_region
      _
    $region13: #{tpu_custom_call.1} parent=1 // pred_fallthru
      _
    // Predicated region
    $region14: #{tpu_custom_call.1} parent=1 // pred_check
      _
    $region15: #{tpu_custom_call.1} parent=1 // pred_check_branch
      %18 = sbr.rel (0) target = $region17
    $region16: #{tpu_custom_call.1} parent=1 // pred_region
      _
    $region17: #{tpu_custom_call.1} parent=1 // pred_fallthru
      _
    // Predicated region
    $region18: #{tpu_custom_call.1} parent=1 // pred_check
      _
    $region19: #{tpu_custom_call.1} parent=1 // pred_check_branch
      %20 = sbr.rel (0) target = $region21
    $region20: #{tpu_custom_call.1} parent=1 // pred_region
      _
    $region21: #{tpu_custom_call.1} parent=1 // pred_fallthru
      _
    %v21 = vld [vmem:[%s0] sm:$0xff]
    %v22 = vld [vmem:[%s3] sm:$0xff]
    %v23 = vld [vmem:[%s3 + $0x8] sm:$0xff]
    %v24 = vld [vmem:[%s3 + $0x10] sm:$0xff]
    %v25 = vld [vmem:[%s3 + $0x18] sm:$0xff]
    %v26 = vld [vmem:[%s3 + $0x20] sm:$0xff]
    %v27 = vld [vmem:[%s3 + $0x28] sm:$0xff]
    %v28 = vld [vmem:[%s3 + $0x30] sm:$0xff]
    %v29 = vld [vmem:[%s3 + $0x38] sm:$0xff]
    %v30 = vld [vmem:[%s3 + $0x40] sm:$0xff]
    %v31 = vld [vmem:[%s3 + $0x48] sm:$0xff]
    %v32 = vld [vmem:[%s3 + $0x50] sm:$0xff]
    %v33 = vld [vmem:[%s3 + $0x58] sm:$0xff]
    %v34 = vld [vmem:[%s3 + $0x60] sm:$0xff]
    %v35 = vld [vmem:[%s3 + $0x68] sm:$0xff]
    %v36 = vld [vmem:[%s3 + $0x70] sm:$0xff]
    %v37 = vld [vmem:[%s3 + $0x78] sm:$0xff]
    %v38 = vld [vmem:[%s3 + $0x80] sm:$0xff]
    %v39 = vld [vmem:[%s3 + $0x88] sm:$0xff]
    %v40 = vld [vmem:[%s3 + $0x90] sm:$0xff]
    %v41 = vld [vmem:[%s3 + $0x98] sm:$0xff]
    %v42 = vld [vmem:[%s3 + $0xa0] sm:$0xff]
    %v43 = vld [vmem:[%s3 + $0xa8] sm:$0xff]
    %v44 = vld [vmem:[%s3 + $0xb0] sm:$0xff]
    %v45 = vld [vmem:[%s3 + $0xb8] sm:$0xff]
    %v46 = vld [vmem:[%s3 + $0xc0] sm:$0xff]
    %v47 = vld [vmem:[%s3 + $0xc8] sm:$0xff]
    %v48 = vld [vmem:[%s3 + $0xd0] sm:$0xff]
    %v49 = vld [vmem:[%s3 + $0xd8] sm:$0xff]
    %v50 = vld [vmem:[%s3 + $0xe0] sm:$0xff]
    %v51 = vld [vmem:[%s3 + $0xe8] sm:$0xff]
    %v52 = vld [vmem:[%s3 + $0xf0] sm:$0xff]
    %v53 = vld [vmem:[%s3 + $0xf8] sm:$0xff]
    %v54 = vld [vmem:[%s3 + $0x100] sm:$0xff]
    %v55 = vld [vmem:[%s3 + $0x108] sm:$0xff]
    %v56 = vld [vmem:[%s3 + $0x110] sm:$0xff]
    %v57 = vld [vmem:[%s3 + $0x118] sm:$0xff]
    %v58 = vld [vmem:[%s3 + $0x120] sm:$0xff]
    %v59 = vld [vmem:[%s3 + $0x128] sm:$0xff]
    %v60 = vld [vmem:[%s3 + $0x130] sm:$0xff]
    %v61 = vld [vmem:[%s3 + $0x138] sm:$0xff]
    %v62 = vld [vmem:[%s3 + $0x140] sm:$0xff]
    %v63 = vld [vmem:[%s3 + $0x148] sm:$0xff]
    %v64 = vld [vmem:[%s3 + $0x150] sm:$0xff]
    %v65 = vld [vmem:[%s3 + $0x158] sm:$0xff]
    %v66 = vld [vmem:[%s3 + $0x160] sm:$0xff]
    %v67 = vld [vmem:[%s3 + $0x168] sm:$0xff]
    %v68 = vld [vmem:[%s3 + $0x170] sm:$0xff]
    %v69 = vld [vmem:[%s3 + $0x178] sm:$0xff]
    %v70 = vld [vmem:[%s3 + $0x180] sm:$0xff]
    %v71 = vld [vmem:[%s3 + $0x188] sm:$0xff]
    %v72 = vld [vmem:[%s3 + $0x190] sm:$0xff]
    %v73 = vld [vmem:[%s3 + $0x198] sm:$0xff]
    %v74 = vld [vmem:[%s3 + $0x1a0] sm:$0xff]
    %v75 = vld [vmem:[%s3 + $0x1a8] sm:$0xff]
    %v76 = vld [vmem:[%s3 + $0x1b0] sm:$0xff]
    %v77 = vld [vmem:[%s3 + $0x1b8] sm:$0xff]
    %v78 = vld [vmem:[%s3 + $0x1c0] sm:$0xff]
    %v79 = vld [vmem:[%s3 + $0x1c8] sm:$0xff]
    %v80 = vld [vmem:[%s3 + $0x1d0] sm:$0xff]
    %v81 = vld [vmem:[%s3 + $0x1d8] sm:$0xff]
    %v82 = vld [vmem:[%s3 + $0x1e0] sm:$0xff]
    %v83 = vld [vmem:[%s3 + $0x1e8] sm:$0xff]
    %v84 = vld [vmem:[%s3 + $0x1f0] sm:$0xff]
    %v85 = vld [vmem:[%s3 + $0x1f8] sm:$0xff]
    %v87 = vcombine.high %v21, %v21
    %v89 = vunpack.c.l.s4 1983009808
    %v90 = vunpack.c.0.s8 %v89
    %v91 = vlaneseq
    %v92 = vshrl.u32 %v91, 7
    %v93 = vsub.s32 %v90, %v92
    %v94 = vrot.slane %v21, %v93
    %v96 = vunpack.c.l.s4 1983009808
    %v97 = vunpack.c.0.s8 %v96
    %v98 = vlaneseq
    %v99 = vshrl.u32 %v98, 7
    %v100 = vsub.s32 %v97, %v99
    %v101 = vrot.slane %v87, %v100
    %v102 = vcombine.high %v94, %v94
    %v103 = vcombine.high %v101, %v101
    %108 = vmatprep.subr.mxu0 0.0
    %109 = vmatpush1.msra.mxu0 %v37
    %110 = vmatprep.subr.mxu0 0.0
    %111 = vmatpush1.msra.mxu0 %v36
    %112 = vmatprep.subr.mxu0 0.0
    %113 = vmatpush1.msra.mxu0 %v35
    %114 = vmatprep.subr.mxu0 0.0
    %115 = vmatpush1.msra.mxu0 %v34
    %116 = vmatprep.subr.mxu0 0.0
    %117 = vmatpush1.msra.mxu0 %v33
    %118 = vmatprep.subr.mxu0 0.0
    %119 = vmatpush1.msra.mxu0 %v32
    %120 = vmatprep.subr.mxu0 0.0
    %121 = vmatpush1.msra.mxu0 %v31
    %122 = vmatprep.subr.mxu0 0.0
    %123 = vmatpush1.msra.mxu0 %v30
    %124 = vmatprep.subr.mxu0 0.0
    %125 = vmatpush1.msra.mxu0 %v29
    %126 = vmatprep.subr.mxu0 0.0
    %127 = vmatpush1.msra.mxu0 %v28
    %128 = vmatprep.subr.mxu0 0.0
    %129 = vmatpush1.msra.mxu0 %v27
    %130 = vmatprep.subr.mxu0 0.0
    %131 = vmatpush1.msra.mxu0 %v26
    %132 = vmatprep.subr.mxu0 0.0
    %133 = vmatpush1.msra.mxu0 %v25
    %134 = vmatprep.subr.mxu0 0.0
    %135 = vmatpush1.msra.mxu0 %v24
    %136 = vmatprep.subr.mxu0 0.0
    %137 = vmatpush1.msra.mxu0 %v23
    %138 = vmatprep.subr.mxu0 0.0
    %139 = vmatpush1.msra.mxu0 %v22
    %140 = vmatprep.subr.mxu0 0.0
    %141 = vmatpush2.msra.mxu0 %v53
    %142 = vmatprep.subr.mxu0 0.0
    %143 = vmatpush2.msra.mxu0 %v52
    %144 = vmatprep.subr.mxu0 0.0
    %145 = vmatpush2.msra.mxu0 %v51
    %146 = vmatprep.subr.mxu0 0.0
    %147 = vmatpush2.msra.mxu0 %v50
    %148 = vmatprep.subr.mxu0 0.0
    %149 = vmatpush2.msra.mxu0 %v49
    %150 = vmatprep.subr.mxu0 0.0
    %151 = vmatpush2.msra.mxu0 %v48
    %152 = vmatprep.subr.mxu0 0.0
    %153 = vmatpush2.msra.mxu0 %v47
    %154 = vmatprep.subr.mxu0 0.0
    %155 = vmatpush2.msra.mxu0 %v46
    %156 = vmatprep.subr.mxu0 0.0
    %157 = vmatpush2.msra.mxu0 %v45
    %158 = vmatprep.subr.mxu0 0.0
    %159 = vmatpush2.msra.mxu0 %v44
    %160 = vmatprep.subr.mxu0 0.0
    %161 = vmatpush2.msra.mxu0 %v43
    %162 = vmatprep.subr.mxu0 0.0
    %163 = vmatpush2.msra.mxu0 %v42
    %164 = vmatprep.subr.mxu0 0.0
    %165 = vmatpush2.msra.mxu0 %v41
    %166 = vmatprep.subr.mxu0 0.0
    %167 = vmatpush2.msra.mxu0 %v40
    %168 = vmatprep.subr.mxu0 0.0
    %169 = vmatpush2.msra.mxu0 %v39
    %170 = vmatprep.subr.mxu0 0.0
    %171 = vmatpush2.msra.mxu0 %v38
    %172 = vmatprep.mubr.f32.mxu0 %v102
    %173 = vmatmul.mubr.f32.gmra.mxu0 %v94
    %v174 = vpop.f32.mrf.mxu0
    %v175 = vadd.f32 0.0, %v174
    %v176 = vpop.f32.mrf.mxu0
    %177 = vdwg.mxu0
    %178 = vmatprep.subr.mxu0 0.0
    %179 = vmatpush1.msra.mxu0 %v69
    %180 = vmatprep.subr.mxu0 0.0
    %181 = vmatpush1.msra.mxu0 %v68
    %182 = vmatprep.subr.mxu0 0.0
    %183 = vmatpush1.msra.mxu0 %v67
    %184 = vmatprep.subr.mxu0 0.0
    %185 = vmatpush1.msra.mxu0 %v66
    %186 = vmatprep.subr.mxu0 0.0
    %187 = vmatpush1.msra.mxu0 %v65
    %188 = vmatprep.subr.mxu0 0.0
    %189 = vmatpush1.msra.mxu0 %v64
    %190 = vmatprep.subr.mxu0 0.0
    %191 = vmatpush1.msra.mxu0 %v63
    %192 = vmatprep.subr.mxu0 0.0
    %193 = vmatpush1.msra.mxu0 %v62
    %194 = vmatprep.subr.mxu0 0.0
    %195 = vmatpush1.msra.mxu0 %v61
    %196 = vmatprep.subr.mxu0 0.0
    %197 = vmatpush1.msra.mxu0 %v60
    %198 = vmatprep.subr.mxu0 0.0
    %199 = vmatpush1.msra.mxu0 %v59
    %200 = vmatprep.subr.mxu0 0.0
    %201 = vmatpush1.msra.mxu0 %v58
    %202 = vmatprep.subr.mxu0 0.0
    %203 = vmatpush1.msra.mxu0 %v57
    %204 = vmatprep.subr.mxu0 0.0
    %205 = vmatpush1.msra.mxu0 %v56
    %206 = vmatprep.subr.mxu0 0.0
    %207 = vmatpush1.msra.mxu0 %v55
    %208 = vmatprep.subr.mxu0 0.0
    %209 = vmatpush1.msra.mxu0 %v54
    %210 = vmatprep.subr.mxu0 0.0
    %211 = vmatpush2.msra.mxu0 %v85
    %212 = vmatprep.subr.mxu0 0.0
    %213 = vmatpush2.msra.mxu0 %v84
    %214 = vmatprep.subr.mxu0 0.0
    %215 = vmatpush2.msra.mxu0 %v83
    %216 = vmatprep.subr.mxu0 0.0
    %217 = vmatpush2.msra.mxu0 %v82
    %218 = vmatprep.subr.mxu0 0.0
    %219 = vmatpush2.msra.mxu0 %v81
    %220 = vmatprep.subr.mxu0 0.0
    %221 = vmatpush2.msra.mxu0 %v80
    %222 = vmatprep.subr.mxu0 0.0
    %223 = vmatpush2.msra.mxu0 %v79
    %224 = vmatprep.subr.mxu0 0.0
    %225 = vmatpush2.msra.mxu0 %v78
    %226 = vmatprep.subr.mxu0 0.0
    %227 = vmatpush2.msra.mxu0 %v77
    %228 = vmatprep.subr.mxu0 0.0
    %229 = vmatpush2.msra.mxu0 %v76
    %230 = vmatprep.subr.mxu0 0.0
    %231 = vmatpush2.msra.mxu0 %v75
    %232 = vmatprep.subr.mxu0 0.0
    %233 = vmatpush2.msra.mxu0 %v74
    %234 = vmatprep.subr.mxu0 0.0
    %235 = vmatpush2.msra.mxu0 %v73
    %236 = vmatprep.subr.mxu0 0.0
    %237 = vmatpush2.msra.mxu0 %v72
    %238 = vmatprep.subr.mxu0 0.0
    %239 = vmatpush2.msra.mxu0 %v71
    %240 = vmatprep.subr.mxu0 0.0
    %241 = vmatpush2.msra.mxu0 %v70
    %242 = vmatprep.mubr.f32.mxu0 %v103
    %243 = vmatmul.mubr.f32.gmra.mxu0 %v101
    %v244 = vpop.f32.mrf.mxu0
    %v245 = vadd.f32 %v175, %v244
    %v246 = vpop.f32.mrf.mxu0
    %247 = vdwg.mxu0
    %v248 = vmul.f32 %v245, 0.0625
    %v249 = vld [vmem:[%s1] sm:$0xff]
    %v250 = vld [vmem:[%s1 + $0x8] sm:$0xff]
    %v251 = vld [vmem:[%s1 + $0x10] sm:$0xff]
    %v252 = vld [vmem:[%s1 + $0x18] sm:$0xff]
    %vm253 = vcmask 261120
    %v255 = vsel %vm253, %v248, 0
    %257 = vmatprep.subr.mxu0 0.0
    %258 = vmatpush1.msra.mxu0 0.0
    %259 = vmatprep.subr.mxu0 0.0
    %260 = vmatpush1.msra.mxu0 0.0
    %261 = vmatprep.subr.mxu0 0.0
    %262 = vmatpush1.msra.mxu0 0.0
    %263 = vmatprep.subr.mxu0 0.0
    %264 = vmatpush1.msra.mxu0 0.0
    %265 = vmatprep.subr.mxu0 0.0
    %266 = vmatpush1.msra.mxu0 0.0
    %267 = vmatprep.subr.mxu0 0.0
    %268 = vmatpush1.msra.mxu0 0.0
    %269 = vmatprep.subr.mxu0 0.0
    %270 = vmatpush1.msra.mxu0 0.0
    %271 = vmatprep.subr.mxu0 0.0
    %272 = vmatpush1.msra.mxu0 0.0
    %273 = vmatprep.subr.mxu0 0.0
    %274 = vmatpush1.msra.mxu0 0.0
    %275 = vmatprep.subr.mxu0 0.0
    %276 = vmatpush1.msra.mxu0 0.0
    %277 = vmatprep.subr.mxu0 0.0
    %278 = vmatpush1.msra.mxu0 0.0
    %279 = vmatprep.subr.mxu0 0.0
    %280 = vmatpush1.msra.mxu0 0.0
    %281 = vmatprep.subr.mxu0 0.0
    %282 = vmatpush1.msra.mxu0 %v252
    %283 = vmatprep.subr.mxu0 0.0
    %284 = vmatpush1.msra.mxu0 %v251
    %285 = vmatprep.subr.mxu0 0.0
    %286 = vmatpush1.msra.mxu0 %v250
    %287 = vmatprep.subr.mxu0 0.0
    %288 = vmatpush1.msra.mxu0 %v249
    %289 = vmatprep.subr.mxu0 0.0
    %290 = vmatpush2.msra.mxu0 0.0
    %291 = vmatprep.subr.mxu0 0.0
    %292 = vmatpush2.msra.mxu0 0.0
    %293 = vmatprep.subr.mxu0 0.0
    %294 = vmatpush2.msra.mxu0 0.0
    %295 = vmatprep.subr.mxu0 0.0
    %296 = vmatpush2.msra.mxu0 0.0
    %297 = vmatprep.subr.mxu0 0.0
    %298 = vmatpush2.msra.mxu0 0.0
    %299 = vmatprep.subr.mxu0 0.0
    %300 = vmatpush2.msra.mxu0 0.0
    %301 = vmatprep.subr.mxu0 0.0
    %302 = vmatpush2.msra.mxu0 0.0
    %303 = vmatprep.subr.mxu0 0.0
    %304 = vmatpush2.msra.mxu0 0.0
    %305 = vmatprep.subr.mxu0 0.0
    %306 = vmatpush2.msra.mxu0 0.0
    %307 = vmatprep.subr.mxu0 0.0
    %308 = vmatpush2.msra.mxu0 0.0
    %309 = vmatprep.subr.mxu0 0.0
    %310 = vmatpush2.msra.mxu0 0.0
    %311 = vmatprep.subr.mxu0 0.0
    %312 = vmatpush2.msra.mxu0 0.0
    %313 = vmatprep.subr.mxu0 0.0
    %314 = vmatpush2.msra.mxu0 0.0
    %315 = vmatprep.subr.mxu0 0.0
    %316 = vmatpush2.msra.mxu0 0.0
    %317 = vmatprep.subr.mxu0 0.0
    %318 = vmatpush2.msra.mxu0 0.0
    %319 = vmatprep.subr.mxu0 0.0
    %320 = vmatpush2.msra.mxu0 0.0
    %321 = vmatprep.mubr.f32.mxu0 0.0
    %322 = vmatmul.mubr.f32.gmra.mxu0 %v255
    %v323 = vpop.f32.mrf.mxu0
    %v324 = vadd.f32 0.0, %v323
    %v325 = vpop.f32.mrf.mxu0
    %326 = vdwg.mxu0
    %v327 = vmax.f32 %v324, 0.0
    %v328 = vld [vmem:[%s2] sm:$0x3]
    %vm329 = vcmask 15360
    %v331 = vsel %vm329, %v327, 0
    %vm333 = vcmask 1041408
    %v335 = vsel %vm333, %v328, 0
    %337 = vmatprep.subr.mxu0 0.0
    %338 = vmatpush1.msra.mxu0 0.0
    %339 = vmatprep.subr.mxu0 0.0
    %340 = vmatpush1.msra.mxu0 0.0
    %341 = vmatprep.subr.mxu0 0.0
    %342 = vmatpush1.msra.mxu0 0.0
    %343 = vmatprep.subr.mxu0 0.0
    %344 = vmatpush1.msra.mxu0 0.0
    %345 = vmatprep.subr.mxu0 0.0
    %346 = vmatpush1.msra.mxu0 0.0
    %347 = vmatprep.subr.mxu0 0.0
    %348 = vmatpush1.msra.mxu0 0.0
    %349 = vmatprep.subr.mxu0 0.0
    %350 = vmatpush1.msra.mxu0 0.0
    %351 = vmatprep.subr.mxu0 0.0
    %352 = vmatpush1.msra.mxu0 0.0
    %353 = vmatprep.subr.mxu0 0.0
    %354 = vmatpush1.msra.mxu0 0.0
    %355 = vmatprep.subr.mxu0 0.0
    %356 = vmatpush1.msra.mxu0 0.0
    %357 = vmatprep.subr.mxu0 0.0
    %358 = vmatpush1.msra.mxu0 0.0
    %359 = vmatprep.subr.mxu0 0.0
    %360 = vmatpush1.msra.mxu0 0.0
    %361 = vmatprep.subr.mxu0 0.0
    %362 = vmatpush1.msra.mxu0 0.0
    %363 = vmatprep.subr.mxu0 0.0
    %364 = vmatpush1.msra.mxu0 0.0
    %365 = vmatprep.subr.mxu0 0.0
    %366 = vmatpush1.msra.mxu0 0.0
    %367 = vmatprep.subr.mxu0 0.0
    %368 = vmatpush1.msra.mxu0 %v335
    %369 = vmatprep.subr.mxu0 0.0
    %370 = vmatpush2.msra.mxu0 0.0
    %371 = vmatprep.subr.mxu0 0.0
    %372 = vmatpush2.msra.mxu0 0.0
    %373 = vmatprep.subr.mxu0 0.0
    %374 = vmatpush2.msra.mxu0 0.0
    %375 = vmatprep.subr.mxu0 0.0
    %376 = vmatpush2.msra.mxu0 0.0
    %377 = vmatprep.subr.mxu0 0.0
    %378 = vmatpush2.msra.mxu0 0.0
    %379 = vmatprep.subr.mxu0 0.0
    %380 = vmatpush2.msra.mxu0 0.0
    %381 = vmatprep.subr.mxu0 0.0
    %382 = vmatpush2.msra.mxu0 0.0
    %383 = vmatprep.subr.mxu0 0.0
    %384 = vmatpush2.msra.mxu0 0.0
    %385 = vmatprep.subr.mxu0 0.0
    %386 = vmatpush2.msra.mxu0 0.0
    %387 = vmatprep.subr.mxu0 0.0
    %388 = vmatpush2.msra.mxu0 0.0
    %389 = vmatprep.subr.mxu0 0.0
    %390 = vmatpush2.msra.mxu0 0.0
    %391 = vmatprep.subr.mxu0 0.0
    %392 = vmatpush2.msra.mxu0 0.0
    %393 = vmatprep.subr.mxu0 0.0
    %394 = vmatpush2.msra.mxu0 0.0
    %395 = vmatprep.subr.mxu0 0.0
    %396 = vmatpush2.msra.mxu0 0.0
    %397 = vmatprep.subr.mxu0 0.0
    %398 = vmatpush2.msra.mxu0 0.0
    %399 = vmatprep.subr.mxu0 0.0
    %400 = vmatpush2.msra.mxu0 0.0
    %401 = vmatprep.mubr.f32.mxu0 0.0
    %402 = vmatmul.mubr.f32.gmra.mxu0 %v331
    %v403 = vpop.f32.mrf.mxu0
    %v404 = vadd.f32 0.0, %v403
    %v405 = vpop.f32.mrf.mxu0
    %406 = vdwg.mxu0
    %v407 = vxor.u32 %v404, 2147483648
    %v408 = vmul.f32 %v407, 1.442695
    %v409 = vpow.pop %v408
    %v410 = vadd.f32 %v409, 1.0
    %v411 = vrcp.pop %v410
    %v412 = vmul.f32 1.0, %v411
    %v413 = vld [vmem:[%s4] sm:$0xff]
    %v414 = vld [vmem:[%s4 + $0x8] sm:$0xff]
    %v415 = vld [vmem:[%s4 + $0x10] sm:$0xff]
    %v416 = vld [vmem:[%s4 + $0x18] sm:$0xff]
    %v417 = vld [vmem:[%s4 + $0x20] sm:$0xff]
    %v418 = vld [vmem:[%s4 + $0x28] sm:$0xff]
    %v419 = vld [vmem:[%s4 + $0x30] sm:$0xff]
    %v420 = vld [vmem:[%s4 + $0x38] sm:$0xff]
    %v421 = vld [vmem:[%s4 + $0x40] sm:$0xff]
    %v422 = vld [vmem:[%s4 + $0x48] sm:$0xff]
    %v423 = vld [vmem:[%s4 + $0x50] sm:$0xff]
    %v424 = vld [vmem:[%s4 + $0x58] sm:$0xff]
    %v425 = vld [vmem:[%s4 + $0x60] sm:$0xff]
    %v426 = vld [vmem:[%s4 + $0x68] sm:$0xff]
    %v427 = vld [vmem:[%s4 + $0x70] sm:$0xff]
    %v428 = vld [vmem:[%s4 + $0x78] sm:$0xff]
    %v430 = vsel %vm253, %v412, 0
    %432 = vmatprep.subr.mxu0 0.0
    %433 = vmatpush1.msra.mxu0 0.0
    %434 = vmatprep.subr.mxu0 0.0
    %435 = vmatpush1.msra.mxu0 0.0
    %436 = vmatprep.subr.mxu0 0.0
    %437 = vmatpush1.msra.mxu0 0.0
    %438 = vmatprep.subr.mxu0 0.0
    %439 = vmatpush1.msra.mxu0 0.0
    %440 = vmatprep.subr.mxu0 0.0
    %441 = vmatpush1.msra.mxu0 0.0
    %442 = vmatprep.subr.mxu0 0.0
    %443 = vmatpush1.msra.mxu0 0.0
    %444 = vmatprep.subr.mxu0 0.0
    %445 = vmatpush1.msra.mxu0 0.0
    %446 = vmatprep.subr.mxu0 0.0
    %447 = vmatpush1.msra.mxu0 0.0
    %448 = vmatprep.subr.mxu0 0.0
    %449 = vmatpush1.msra.mxu0 0.0
    %450 = vmatprep.subr.mxu0 0.0
    %451 = vmatpush1.msra.mxu0 0.0
    %452 = vmatprep.subr.mxu0 0.0
    %453 = vmatpush1.msra.mxu0 0.0
    %454 = vmatprep.subr.mxu0 0.0
    %455 = vmatpush1.msra.mxu0 0.0
    %456 = vmatprep.subr.mxu0 %v426
    %457 = vmatpush1.msra.mxu0 %v425
    %458 = vmatprep.subr.mxu0 %v422
    %459 = vmatpush1.msra.mxu0 %v421
    %460 = vmatprep.subr.mxu0 %v418
    %461 = vmatpush1.msra.mxu0 %v417
    %462 = vmatprep.subr.mxu0 %v414
    %463 = vmatpush1.msra.mxu0 %v413
    %464 = vmatprep.subr.mxu0 0.0
    %465 = vmatpush2.msra.mxu0 0.0
    %466 = vmatprep.subr.mxu0 0.0
    %467 = vmatpush2.msra.mxu0 0.0
    %468 = vmatprep.subr.mxu0 0.0
    %469 = vmatpush2.msra.mxu0 0.0
    %470 = vmatprep.subr.mxu0 0.0
    %471 = vmatpush2.msra.mxu0 0.0
    %472 = vmatprep.subr.mxu0 0.0
    %473 = vmatpush2.msra.mxu0 0.0
    %474 = vmatprep.subr.mxu0 0.0
    %475 = vmatpush2.msra.mxu0 0.0
    %476 = vmatprep.subr.mxu0 0.0
    %477 = vmatpush2.msra.mxu0 0.0
    %478 = vmatprep.subr.mxu0 0.0
    %479 = vmatpush2.msra.mxu0 0.0
    %480 = vmatprep.subr.mxu0 0.0
    %481 = vmatpush2.msra.mxu0 0.0
    %482 = vmatprep.subr.mxu0 0.0
    %483 = vmatpush2.msra.mxu0 0.0
    %484 = vmatprep.subr.mxu0 0.0
    %485 = vmatpush2.msra.mxu0 0.0
    %486 = vmatprep.subr.mxu0 0.0
    %487 = vmatpush2.msra.mxu0 0.0
    %488 = vmatprep.subr.mxu0 0.0
    %489 = vmatpush2.msra.mxu0 0.0
    %490 = vmatprep.subr.mxu0 0.0
    %491 = vmatpush2.msra.mxu0 0.0
    %492 = vmatprep.subr.mxu0 0.0
    %493 = vmatpush2.msra.mxu0 0.0
    %494 = vmatprep.subr.mxu0 0.0
    %495 = vmatpush2.msra.mxu0 0.0
    %496 = vmatprep.mubr.f32.mxu0 0.0
    %497 = vmatmul.mubr.f32.gmra.mxu0 %v430
    %v498 = vpop.f32.mrf.mxu0
    %v499 = vadd.f32 0.0, %v498
    %v500 = vpop.f32.mrf.mxu0
    %v501 = vadd.f32 0.0, %v500
    %502 = vdwg.mxu0
    %503 = vmatprep.subr.mxu0 0.0
    %504 = vmatpush1.msra.mxu0 0.0
    %505 = vmatprep.subr.mxu0 0.0
    %506 = vmatpush1.msra.mxu0 0.0
    %507 = vmatprep.subr.mxu0 0.0
    %508 = vmatpush1.msra.mxu0 0.0
    %509 = vmatprep.subr.mxu0 0.0
    %510 = vmatpush1.msra.mxu0 0.0
    %511 = vmatprep.subr.mxu0 0.0
    %512 = vmatpush1.msra.mxu0 0.0
    %513 = vmatprep.subr.mxu0 0.0
    %514 = vmatpush1.msra.mxu0 0.0
    %515 = vmatprep.subr.mxu0 0.0
    %516 = vmatpush1.msra.mxu0 0.0
    %517 = vmatprep.subr.mxu0 0.0
    %518 = vmatpush1.msra.mxu0 0.0
    %519 = vmatprep.subr.mxu0 0.0
    %520 = vmatpush1.msra.mxu0 0.0
    %521 = vmatprep.subr.mxu0 0.0
    %522 = vmatpush1.msra.mxu0 0.0
    %523 = vmatprep.subr.mxu0 0.0
    %524 = vmatpush1.msra.mxu0 0.0
    %525 = vmatprep.subr.mxu0 0.0
    %526 = vmatpush1.msra.mxu0 0.0
    %527 = vmatprep.subr.mxu0 %v428
    %528 = vmatpush1.msra.mxu0 %v427
    %529 = vmatprep.subr.mxu0 %v424
    %530 = vmatpush1.msra.mxu0 %v423
    %531 = vmatprep.subr.mxu0 %v420
    %532 = vmatpush1.msra.mxu0 %v419
    %533 = vmatprep.subr.mxu0 %v416
    %534 = vmatpush1.msra.mxu0 %v415
    %535 = vmatprep.subr.mxu0 0.0
    %536 = vmatpush2.msra.mxu0 0.0
    %537 = vmatprep.subr.mxu0 0.0
    %538 = vmatpush2.msra.mxu0 0.0
    %539 = vmatprep.subr.mxu0 0.0
    %540 = vmatpush2.msra.mxu0 0.0
    %541 = vmatprep.subr.mxu0 0.0
    %542 = vmatpush2.msra.mxu0 0.0
    %543 = vmatprep.subr.mxu0 0.0
    %544 = vmatpush2.msra.mxu0 0.0
    %545 = vmatprep.subr.mxu0 0.0
    %546 = vmatpush2.msra.mxu0 0.0
    %547 = vmatprep.subr.mxu0 0.0
    %548 = vmatpush2.msra.mxu0 0.0
    %549 = vmatprep.subr.mxu0 0.0
    %550 = vmatpush2.msra.mxu0 0.0
    %551 = vmatprep.subr.mxu0 0.0
    %552 = vmatpush2.msra.mxu0 0.0
    %553 = vmatprep.subr.mxu0 0.0
    %554 = vmatpush2.msra.mxu0 0.0
    %555 = vmatprep.subr.mxu0 0.0
    %556 = vmatpush2.msra.mxu0 0.0
    %557 = vmatprep.subr.mxu0 0.0
    %558 = vmatpush2.msra.mxu0 0.0
    %559 = vmatprep.subr.mxu0 0.0
    %560 = vmatpush2.msra.mxu0 0.0
    %561 = vmatprep.subr.mxu0 0.0
    %562 = vmatpush2.msra.mxu0 0.0
    %563 = vmatprep.subr.mxu0 0.0
    %564 = vmatpush2.msra.mxu0 0.0
    %565 = vmatprep.subr.mxu0 0.0
    %566 = vmatpush2.msra.mxu0 0.0
    %567 = vmatprep.mubr.f32.mxu0 0.0
    %568 = vmatmul.mubr.f32.gmra.mxu0 %v430
    %v569 = vpop.f32.mrf.mxu0
    %v570 = vadd.f32 0.0, %v569
    %v571 = vpop.f32.mrf.mxu0
    %v572 = vadd.f32 0.0, %v571
    %573 = vdwg.mxu0
    %v578 = vcombine.low %v499, %v501
    %v579 = vcombine.low %v570, %v572
    %v581 = vunpack.c.l.s4 1983009808
    %v582 = vunpack.c.0.s8 %v581
    %v583 = vlaneseq
    %v584 = vshrl.u32 %v583, 7
    %v585 = vsub.s32 %v582, %v584
    %v586 = vrot.slane %v578, %v585
    %v588 = vunpack.c.l.s4 1983009808
    %v589 = vunpack.c.0.s8 %v588
    %v590 = vlaneseq
    %v591 = vshrl.u32 %v590, 7
    %v592 = vsub.s32 %v589, %v591
    %v593 = vrot.slane %v579, %v592
    %v594 = vcombine.low %v586, %v593
    %v596 = vmul.f32 %v21, %v594
    %597 = vst [vmem:[#allocation2] sm:$0xff] %v596
    // Predicated region
    $region22: #{tpu_custom_call.1} parent=1 // pred_check
      _
    $region23: #{tpu_custom_call.1} parent=1 // pred_check_branch
      %599 = sbr.rel (0) target = $region25
    $region24: #{tpu_custom_call.1} parent=1 // pred_region
      %s601 = ssub.s32 128, 128
      %602 = vsyncadd [#allocation3], %s601
      %s604 = sshll.u32 [#allocation2], 4
      %s605 = int_to_ptr.vmem [resolvable:$true] %s604
      %607 = dma.vmem_to_hbm [thread:$0]  %s605, 128, %s5, [#allocation3]
    $region25: #{tpu_custom_call.1} parent=1 // pred_fallthru
      _
    // Predicated region
    $region26: #{tpu_custom_call.1} parent=1 // pred_check
      _
    $region27: #{tpu_custom_call.1} parent=1 // pred_check_branch
      %609 = sbr.rel (0) target = $region29
    $region28: #{tpu_custom_call.1} parent=1 // pred_region
      %610 = dma.done [#allocation3], 128
    $region29: #{tpu_custom_call.1} parent=1 // pred_fallthru
      _
    %611 = vsyncpa [#allocation3], 1

</llo_original>
